<compile_context>
chip_gen: v6e
topology: v6e:2x2x1
jax: 0.10.0
libtpu: 0.0.40
codegen_flags: <defaults>
</compile_context>

<pallas_src>
import functools
import math

import jax
import jax.numpy as jnp
from jax.experimental import pallas as pl
from jax.experimental.pallas import tpu as pltpu


def _ceil_div(a, b):
    return -(-a // b)


# ---------------------------------------------------------------------------
# Kernels
# ---------------------------------------------------------------------------
def _conv_kernel(y_ref, w_ref, b_ref, *out_refs, q, th, wo, feat, fold_taps,
                 mode, eps, slope, inv_hw):
    """Conv (MXU matmuls over tap-shifted views of the resident sample) + epilogue.

    y_ref : (1, Hc, Wc, F)   bf16  space-to-depth packed, zero-padded sample
    w_ref : (Q*Q*F, Ct)      bf16  tap-concatenated weight slab tile
    b_ref : (1, Ct)          f32   conv bias (skipped under InstanceNorm: it cancels)
    out_refs:
      mode == "plain"      : (o_ref,)            o = leaky(conv + bias)         bf16
      mode == "fused_norm" : (o_ref,)            o = leaky(instancenorm(conv))  bf16
      mode == "split_norm" : (o_ref, stats_ref)  o = raw conv bf16, stats=(s1,s2) f32
    """
    s = pl.program_id(2)            # spatial (output-row tile) axis, innermost
    row0 = s * th
    hw_t = th * wo

    tiles = []
    for dh in range(q):
        for dw in range(q):
            xt = y_ref[0, pl.ds(row0 + dh, th), pl.ds(dw, wo), :]   # (th, Wo, F) bf16
            tiles.append(xt.reshape(hw_t, feat))

    if fold_taps:
        # Single deep matmul: lhs (hw_t, Q*Q*F) x (Q*Q*F, Ct).
        lhs = tiles[0] if len(tiles) == 1 else jnp.concatenate(tiles, axis=1)
        acc = jnp.dot(lhs, w_ref[...], preferred_element_type=jnp.float32)
    else:
        # Unaligned feature dim (stem layer): per-tap matmuls, acc init from tap 0.
        acc = jnp.dot(tiles[0], w_ref[pl.ds(0, feat), :],
                      preferred_element_type=jnp.float32)
        for i in range(1, len(tiles)):
            acc = acc + jnp.dot(tiles[i], w_ref[pl.ds(i * feat, feat), :],
                                preferred_element_type=jnp.float32)

    if mode == "plain":
        (o_ref,) = out_refs
        acc = acc + b_ref[...]
        acc = jnp.where(acc >= 0.0, acc, slope * acc)
        o_ref[0] = acc.astype(o_ref.dtype)
    elif mode == "fused_norm":
        (o_ref,) = out_refs
        # Single-pass (sum, sum-of-squares) statistics; biased variance, f32 math.
        s1 = jnp.sum(acc, axis=0, keepdims=True)
        s2 = jnp.sum(acc * acc, axis=0, keepdims=True)
        mean = s1 * inv_hw
        var = s2 * inv_hw - mean * mean
        acc = (acc - mean) * jax.lax.rsqrt(var + eps)
        acc = jnp.where(acc >= 0.0, acc, slope * acc)
        o_ref[0] = acc.astype(o_ref.dtype)
    else:  # "split_norm": store raw conv, accumulate stats across spatial tiles
        o_ref, stats_ref = out_refs

        @pl.when(s == 0)
        def _init():
            stats_ref[...] = jnp.zeros_like(stats_ref)

        upd = jnp.concatenate(
            [jnp.sum(acc, axis=0, keepdims=True),
             jnp.sum(acc * acc, axis=0, keepdims=True)], axis=0)        # (2, Ct) f32
        stats_ref[0] = stats_ref[0] + upd
        o_ref[0] = acc.astype(o_ref.dtype)


def _norm_kernel(x_ref, stats_ref, o_ref, *, inv_hw, eps, slope):
    """Second pass for spatially tiled InstanceNorm: normalize + LeakyReLU in place."""
    x = x_ref[0].astype(jnp.float32)                  # (hw_t, Ct)
    st = stats_ref[0]                                 # (2, Ct) f32
    mean = st[0:1, :] * inv_hw
    var = st[1:2, :] * inv_hw - mean * mean
    y = (x - mean) * jax.lax.rsqrt(var + eps)
    y = jnp.where(y >= 0.0, y, slope * y)
    o_ref[0] = y.astype(o_ref.dtype)


# ---------------------------------------------------------------------------
# Wrapper-side layout prep (cheap, no HBM blow-up)
# ---------------------------------------------------------------------------
def _pad_cin(cin, stride):
    ss = stride * stride
    m = 16 // math.gcd(16, ss)     # smallest Cin multiple giving F = s*s*Cin % 16 == 0
    return _ceil_div(cin, m) * m


def _space_to_depth(x_nhwc, k, stride, pad, cin_pad):
    """Pad + stride-phase repack: (N,H,W,C) -> (N,Hc,Wc,s*s*Cp) bf16, feats [ph,pw,c]."""
    n, h, w, c = x_nhwc.shape
    hp, wp = h + 2 * pad, w + 2 * pad
    hc, wc = _ceil_div(hp, stride), _ceil_div(wp, stride)
    xp = jnp.pad(x_nhwc.astype(jnp.bfloat16),
                 ((0, 0), (pad, hc * stride - h - pad),
                  (pad, wc * stride - w - pad), (0, cin_pad - c)))
    y = xp.reshape(n, hc, stride, wc, stride, cin_pad)
    y = y.transpose(0, 1, 3, 2, 4, 5).reshape(n, hc, wc, stride * stride * cin_pad)
    ho = (hp - k) // stride + 1
    wo = (wp - k) // stride + 1
    return y, ho, wo, hc, wc


def _weight_slabs(weight, stride, cin_pad, c_pad):
    """(Cout,Cin,K,K) -> (Q*Q*s*s*Cin_pad, c_pad), row order [qh,qw,ph,pw,cin]."""
    cout, cin, k, _ = weight.shape
    q = _ceil_div(k, stride)
    wp = jnp.pad(weight, ((0, c_pad - cout), (0, cin_pad - cin),
                          (0, q * stride - k), (0, q * stride - k)))
    wr = wp.reshape(c_pad, cin_pad, q, stride, q, stride)
    wr = wr.transpose(2, 4, 3, 5, 1, 0)               # (qh, qw, ph, pw, cin, cout)
    return wr.reshape(q * q * stride * stride * cin_pad, c_pad), q


def _vmem_limit_bytes():
    cap = None
    try:
        cap = getattr(pltpu.get_tpu_info(), "vmem_capacity_bytes", None)
    except Exception:
        cap = None
    if not cap:
        cap = 64 * 1024 * 1024                        # assume v7x-sized VMEM if unknown
    return min(cap * 3 // 4, 100 * 1024 * 1024)       # ~48 MiB v7x, ~96 MiB v5e/v6e


def _select_tiles(n, hc, wc, feat, ho, wo, c_pad, t, budget):
    """Largest (c_tile, output-rows-per-tile) whose per-step working set fits VMEM."""
    y_bytes = hc * wc * feat * 2

    def step_bytes(ct, th):
        hw_t = th * wo
        blocks = y_bytes + t * feat * ct * 2 + hw_t * ct * 2     # in / weight / out
        temps = hw_t * t * feat * 2 + hw_t * ct * 4              # im2col lhs + f32 acc
        return 2 * blocks + 2 * temps                            # double-buffer + slack

    nc = c_pad // 128
    cap = 2 if n == 1 else 4            # <=256 lanes at batch 1: feed both v7x cores
    c_cands = [d * 128 for d in range(min(nc, cap), 0, -1) if nc % d == 0]
    th_cands = [d for d in range(ho, 0, -1)
                if ho % d == 0 and (d == ho or (d * wo) % 8 == 0)]

    best = None
    for ct in c_cands:
        for th in th_cands:             # descending: first fit = largest th for this ct
            if step_bytes(ct, th) <= budget:
                cand = (th == ho, th * ct, ct, th)   # prefer single fused pass, then area
                if best is None or cand > best:
                    best = cand
                break
    if best is None:
        return c_cands[-1], th_cands[-1]
    return best[2], best[3]


# ---------------------------------------------------------------------------
# Public entry points
# ---------------------------------------------------------------------------
def downsample_nhwc(x, weight, bias, *, stride=2, padding=1,
                    apply_instancenorm=True, eps=1e-5, slope=0.2,
                    spatial_tile=None, keep_padded_channels=False):
    """Fused Conv2d(+bias) [+InstanceNorm2d] + LeakyReLU.  (N,H,W,Cin) -> (N,Ho,Wo,Cout) bf16."""
    n, h, w, cin = x.shape
    cout, cin_w, k, _ = weight.shape
    assert cin_w == cin

    cin_pad = _pad_cin(cin, stride)
    c_pad = _ceil_div(cout, 128) * 128                 # lane-dense output channels
    y, ho, wo, hc, wc = _space_to_depth(x, k, stride, padding, cin_pad)
    slabs, q = _weight_slabs(weight, stride, cin_pad, c_pad)
    slabs = slabs.astype(jnp.bfloat16)
    bias_p = jnp.pad(bias.astype(jnp.float32), (0, c_pad - cout)).reshape(1, c_pad)

    feat = stride * stride * cin_pad
    t = q * q
    hw = ho * wo
    assert hc >= ho + q - 1 and wc >= wo + q - 1

    vmem_limit = _vmem_limit_bytes()
    c_tile, th = _select_tiles(n, hc, wc, feat, ho, wo, c_pad, t,
                               budget=int(vmem_limit * 0.85))
    if spatial_tile is not None:                       # explicit override (tests/tuning)
        assert ho % spatial_tile == 0
        th = spatial_tile
    assert th == ho or (th * wo) % 8 == 0
    n_ct = c_pad // c_tile
    n_st = ho // th
    # TODO(synk): if the packed sample (hc*wc*F bf16) itself outgrows VMEM (inputs much
    # larger than CycleGAN's 256^2), the activation input needs halo-overlapped manual
    # make_async_copy DMA (memory_space=pl.ANY) instead of a fully resident block.

    if not apply_instancenorm:
        mode = "plain"
    elif n_st == 1:
        mode = "fused_norm"
    else:
        mode = "split_norm"
    fold_taps = (feat % 128 == 0) or (t == 1)

    # Residency by size: keep the larger of {weight slabs, packed sample} as the
    # operand whose index_map is constant along the inner grid axes (not re-streamed).
    w_total = t * feat * c_pad * 2
    y_sample = hc * wc * feat * 2
    cost_batch_outer = (w_total if n_ct == 1 else n * w_total) + n * y_sample
    cost_ct_outer = w_total + n_ct * n * y_sample
    batch_outer = cost_batch_outer <= cost_ct_outer

    if batch_outer:
        grid = (n, n_ct, n_st)
        b_of = lambda g0, g1, g2: g0
        c_of = lambda g0, g1, g2: g1
    else:
        grid = (n_ct, n, n_st)
        b_of = lambda g0, g1, g2: g1
        c_of = lambda g0, g1, g2: g0

    y_spec = pl.BlockSpec((1, hc, wc, feat),
                          lambda g0, g1, g2: (b_of(g0, g1, g2), 0, 0, 0))
    w_spec = pl.BlockSpec((t * feat, c_tile),
                          lambda g0, g1, g2: (0, c_of(g0, g1, g2)))
    bias_spec = pl.BlockSpec((1, c_tile),
                             lambda g0, g1, g2: (0, c_of(g0, g1, g2)))
    o_spec = pl.BlockSpec((1, th * wo, c_tile),
                          lambda g0, g1, g2: (b_of(g0, g1, g2), g2, c_of(g0, g1, g2)))
    stats_spec = pl.BlockSpec((1, 2, c_tile),
                              lambda g0, g1, g2: (b_of(g0, g1, g2), 0, c_of(g0, g1, g2)))

    conv_shape = jax.ShapeDtypeStruct((n, hw, c_pad), jnp.bfloat16)
    if mode == "split_norm":
        out_shape = (conv_shape, jax.ShapeDtypeStruct((n, 2, c_pad), jnp.float32))
        out_specs = (o_spec, stats_spec)
    else:
        out_shape = conv_shape
        out_specs = o_spec

    kernel = functools.partial(_conv_kernel, q=q, th=th, wo=wo, feat=feat,
                               fold_taps=fold_taps, mode=mode, eps=eps, slope=slope,
                               inv_hw=1.0 / hw)
    result = pl.pallas_call(
        kernel,
        out_shape=out_shape,
        grid_spec=pltpu.PrefetchScalarGridSpec(
            num_scalar_prefetch=0,
            grid=grid,
            in_specs=[y_spec, w_spec, bias_spec],
            out_specs=out_specs),
        compiler_params=pltpu.CompilerParams(
            dimension_semantics=("parallel", "parallel", "arbitrary"),
            vmem_limit_bytes=vmem_limit),
    )(y, slabs, bias_p)

    if mode == "split_norm":
        conv_out, stats = result
        out = pl.pallas_call(
            functools.partial(_norm_kernel, inv_hw=1.0 / hw, eps=eps, slope=slope),
            out_shape=conv_shape,
            grid_spec=pltpu.PrefetchScalarGridSpec(
                num_scalar_prefetch=0,
                grid=(n, n_ct, n_st),
                in_specs=[pl.BlockSpec((1, th * wo, c_tile), lambda b, c, s: (b, s, c)),
                          pl.BlockSpec((1, 2, c_tile), lambda b, c, s: (b, 0, c))],
                out_specs=pl.BlockSpec((1, th * wo, c_tile), lambda b, c, s: (b, s, c))),
            compiler_params=pltpu.CompilerParams(
                dimension_semantics=("parallel", "parallel", "parallel"),
                vmem_limit_bytes=vmem_limit),
            input_output_aliases={0: 0},       # normalize the conv buffer in place
        )(conv_out, stats)
    else:
        out = result

    if keep_padded_channels:
        # Preferred when chaining layers: consume the padded NHWC bf16 slab directly
        # and avoid the extra HBM slice/reshape pass below.
        return out.reshape(n, ho, wo, c_pad)
    return out[:, :, :cout].reshape(n, ho, wo, cout)


def downsample(x_nchw, weight, bias, *, stride=2, padding=1,
               apply_instancenorm=True, spatial_tile=None):
    """NCHW / f32 wrapper matching the PyTorch module interface.  When stacking layers,
    call downsample_nhwc directly (NHWC bf16 in/out) and drop these boundary passes."""
    x = jnp.transpose(x_nchw, (0, 2, 3, 1))
    out = downsample_nhwc(x, weight, bias, stride=stride, padding=padding,
                          apply_instancenorm=apply_instancenorm,
                          spatial_tile=spatial_tile)
    return jnp.transpose(out, (0, 3, 1, 2)).astype(jnp.float32)


# ---------------------------------------------------------------------------
# Pure-JAX reference (f32) for validation
# ---------------------------------------------------------------------------
def downsample_ref(x_nchw, weight, bias, *, stride=2, padding=1,
                   apply_instancenorm=True, eps=1e-5, slope=0.2):
    y = jax.lax.conv_general_dilated(
        x_nchw, weight, window_strides=(stride, stride),
        padding=[(padding, padding)] * 2,
        dimension_numbers=("NCHW", "OIHW", "NCHW"))
    y = y + bias[None, :, None, None]
    if apply_instancenorm:
        mean = jnp.mean(y, axis=(2, 3), keepdims=True)
        var = jnp.mean((y - mean) ** 2, axis=(2, 3), keepdims=True)
        y = (y - mean) * jax.lax.rsqrt(var + eps)
    return jnp.where(y >= 0.0, y, slope * y)


if __name__ == "__main__":
    key = jax.random.PRNGKey(0)
    kx, kw, kb, kx2, kw2 = jax.random.split(key, 5)

    N, CIN, H, W = 2, 4, 16, 16
    COUT, K, S, P = 8, 4, 2, 1

    x = jax.random.normal(kx, (N, CIN, H, W), jnp.float32)
    w = jax.random.normal(kw, (COUT, CIN, K, K), jnp.float32) / (CIN * K * K) ** 0.5
    b = 0.1 * jax.random.normal(kb, (COUT,), jnp.float32)

    def check(xi, wi, bi, **cfg):
        fn = jax.jit(functools.partial(downsample, stride=S, padding=P, **cfg))
        out = jax.block_until_ready(fn(xi, wi, bi))
        ref = downsample_ref(xi, wi, bi, stride=S, padding=P,
                             apply_instancenorm=cfg["apply_instancenorm"])
        assert out.shape == ref.shape, (out.shape, ref.shape)
        assert bool(jnp.all(jnp.isfinite(out)))
        err = float(jnp.max(jnp.abs(out - ref)))
        # bf16 matmul operands / bf16 intermediate storage vs f32 reference.
        assert bool(jnp.allclose(out, ref, atol=5e-2, rtol=5e-2)), err

    # Per-tap matmul path (unaligned stem-like F), fused / tiled, with and without norm.
    check(x, w, b, apply_instancenorm=True, spatial_tile=None)    # fused single pass
    check(x, w, b, apply_instancenorm=False, spatial_tile=None)   # conv + bias + leaky
    check(x, w, b, apply_instancenorm=True, spatial_tile=4)       # tiled two-pass norm
    check(x, w, b, apply_instancenorm=False, spatial_tile=2)      # tiled, no norm

    # Folded single-matmul path (F = 4*Cin is a multiple of 128).
    CIN2 = 32
    x2 = jax.random.normal(kx2, (N, CIN2, H, W), jnp.float32)
    w2 = jax.random.normal(kw2, (COUT, CIN2, K, K), jnp.float32) / (CIN2 * K * K) ** 0.5
    check(x2, w2, b, apply_instancenorm=True, spatial_tile=None)
    check(x2, w2, b, apply_instancenorm=True, spatial_tile=4)

    print("KERNEL_OK")
</pallas_src>

<mosaic_0001>
module attributes {stable_mosaic.version = 11 : i64} {
  func.func @_conv_kernel(%arg0: i32, %arg1: i32, %arg2: i32, %arg3: memref<1x9x9x16xbf16, #tpu.memory_space<vmem>>, %arg4: memref<64x128xbf16, #tpu.memory_space<vmem>>, %arg5: memref<1x128xf32, #tpu.memory_space<vmem>>, %arg6: memref<1x64x128xbf16, #tpu.memory_space<vmem>>) attributes {dimension_semantics = [#tpu.dimension_semantics<parallel>, #tpu.dimension_semantics<parallel>, #tpu.dimension_semantics<arbitrary>], iteration_bounds = array<i64: 2, 1, 1>, scalar_prefetch = 0 : i64, scratch_operands = 0 : i64, tpu.core_type = #tpu.core_type<tc>, window_params = [{transform_indices = @transform_0, window_bounds = array<i64: 1, 9, 9, 16>}, {transform_indices = @transform_1, window_bounds = array<i64: 64, 128>}, {transform_indices = @transform_2, window_bounds = array<i64: 1, 128>}, {transform_indices = @transform_3, window_bounds = array<i64: 1, 64, 128>}]} {
    %c8_i32 = arith.constant 8 : i32
    %0 = arith.muli %arg2, %c8_i32 : i32
    %c0_i32 = arith.constant 0 : i32
    %1 = arith.addi %0, %c0_i32 : i32
    %c0 = arith.constant 0 : index
    %2 = arith.index_cast %1 : i32 to index
    %c0_0 = arith.constant 0 : index
    %c0_1 = arith.constant 0 : index
    %3 = vector.load %arg3[%c0, %2, %c0_0, %c0_1] : memref<1x9x9x16xbf16, #tpu.memory_space<vmem>>, vector<1x8x8x16xbf16>
    %4 = vector.shape_cast %3 : vector<1x8x8x16xbf16> to vector<8x8x16xbf16>
    %5 = vector.shape_cast %4 : vector<8x8x16xbf16> to vector<64x16xbf16>
    %c0_i32_2 = arith.constant 0 : i32
    %6 = arith.addi %0, %c0_i32_2 : i32
    %c0_3 = arith.constant 0 : index
    %7 = arith.index_cast %6 : i32 to index
    %c1 = arith.constant 1 : index
    %c0_4 = arith.constant 0 : index
    %8 = vector.load %arg3[%c0_3, %7, %c1, %c0_4] : memref<1x9x9x16xbf16, #tpu.memory_space<vmem>>, vector<1x8x8x16xbf16>
    %9 = vector.shape_cast %8 : vector<1x8x8x16xbf16> to vector<8x8x16xbf16>
    %10 = vector.shape_cast %9 : vector<8x8x16xbf16> to vector<64x16xbf16>
    %c1_i32 = arith.constant 1 : i32
    %11 = arith.addi %0, %c1_i32 : i32
    %c0_5 = arith.constant 0 : index
    %12 = arith.index_cast %11 : i32 to index
    %c0_6 = arith.constant 0 : index
    %c0_7 = arith.constant 0 : index
    %13 = vector.load %arg3[%c0_5, %12, %c0_6, %c0_7] : memref<1x9x9x16xbf16, #tpu.memory_space<vmem>>, vector<1x8x8x16xbf16>
    %14 = vector.shape_cast %13 : vector<1x8x8x16xbf16> to vector<8x8x16xbf16>
    %15 = vector.shape_cast %14 : vector<8x8x16xbf16> to vector<64x16xbf16>
    %c1_i32_8 = arith.constant 1 : i32
    %16 = arith.addi %0, %c1_i32_8 : i32
    %c0_9 = arith.constant 0 : index
    %17 = arith.index_cast %16 : i32 to index
    %c1_10 = arith.constant 1 : index
    %c0_11 = arith.constant 0 : index
    %18 = vector.load %arg3[%c0_9, %17, %c1_10, %c0_11] : memref<1x9x9x16xbf16, #tpu.memory_space<vmem>>, vector<1x8x8x16xbf16>
    %19 = vector.shape_cast %18 : vector<1x8x8x16xbf16> to vector<8x8x16xbf16>
    %20 = vector.shape_cast %19 : vector<8x8x16xbf16> to vector<64x16xbf16>
    %c0_12 = arith.constant 0 : index
    %c0_13 = arith.constant 0 : index
    %21 = vector.load %arg4[%c0_12, %c0_13] : memref<64x128xbf16, #tpu.memory_space<vmem>>, vector<16x128xbf16>
    %cst = arith.constant dense<0.000000e+00> : vector<64x128xf32>
    %22 = tpu.matmul %5, %21, %cst {dimension_numbers = #tpu.dot_dimension_numbers<[1], [0], [0], [1], [0, 0, 1, 1], [], []>} : vector<64x16xbf16>, vector<16x128xbf16>, vector<64x128xf32> -> vector<64x128xf32>
    %c16 = arith.constant 16 : index
    %c0_14 = arith.constant 0 : index
    %23 = vector.load %arg4[%c16, %c0_14] : memref<64x128xbf16, #tpu.memory_space<vmem>>, vector<16x128xbf16>
    %cst_15 = arith.constant dense<0.000000e+00> : vector<64x128xf32>
    %24 = tpu.matmul %10, %23, %cst_15 {dimension_numbers = #tpu.dot_dimension_numbers<[1], [0], [0], [1], [0, 0, 1, 1], [], []>} : vector<64x16xbf16>, vector<16x128xbf16>, vector<64x128xf32> -> vector<64x128xf32>
    %25 = arith.addf %22, %24 : vector<64x128xf32>
    %c32 = arith.constant 32 : index
    %c0_16 = arith.constant 0 : index
    %26 = vector.load %arg4[%c32, %c0_16] : memref<64x128xbf16, #tpu.memory_space<vmem>>, vector<16x128xbf16>
    %cst_17 = arith.constant dense<0.000000e+00> : vector<64x128xf32>
    %27 = tpu.matmul %15, %26, %cst_17 {dimension_numbers = #tpu.dot_dimension_numbers<[1], [0], [0], [1], [0, 0, 1, 1], [], []>} : vector<64x16xbf16>, vector<16x128xbf16>, vector<64x128xf32> -> vector<64x128xf32>
    %28 = arith.addf %25, %27 : vector<64x128xf32>
    %c48 = arith.constant 48 : index
    %c0_18 = arith.constant 0 : index
    %29 = vector.load %arg4[%c48, %c0_18] : memref<64x128xbf16, #tpu.memory_space<vmem>>, vector<16x128xbf16>
    %cst_19 = arith.constant dense<0.000000e+00> : vector<64x128xf32>
    %30 = tpu.matmul %20, %29, %cst_19 {dimension_numbers = #tpu.dot_dimension_numbers<[1], [0], [0], [1], [0, 0, 1, 1], [], []>} : vector<64x16xbf16>, vector<16x128xbf16>, vector<64x128xf32> -> vector<64x128xf32>
    %31 = arith.addf %28, %30 : vector<64x128xf32>
    %cst_20 = arith.constant dense<0.000000e+00> : vector<128xf32>
    %32 = vector.multi_reduction <add>, %31, %cst_20 [0] : vector<64x128xf32> to vector<128xf32>
    %33 = vector.shape_cast %32 : vector<128xf32> to vector<1x128xf32>
    %34 = arith.mulf %31, %31 : vector<64x128xf32>
    %cst_21 = arith.constant dense<0.000000e+00> : vector<128xf32>
    %35 = vector.multi_reduction <add>, %34, %cst_21 [0] : vector<64x128xf32> to vector<128xf32>
    %36 = vector.shape_cast %35 : vector<128xf32> to vector<1x128xf32>
    %cst_22 = arith.constant 1.562500e-02 : f32
    %37 = vector.broadcast %cst_22 : f32 to vector<1x128xf32>
    %38 = arith.mulf %33, %37 : vector<1x128xf32>
    %cst_23 = arith.constant 1.562500e-02 : f32
    %39 = vector.broadcast %cst_23 : f32 to vector<1x128xf32>
    %40 = arith.mulf %36, %39 : vector<1x128xf32>
    %41 = arith.mulf %38, %38 : vector<1x128xf32>
    %42 = arith.subf %40, %41 : vector<1x128xf32>
    %43 = vector.broadcast %38 : vector<1x128xf32> to vector<64x128xf32>
    %44 = arith.subf %31, %43 : vector<64x128xf32>
    %cst_24 = arith.constant 9.99999974E-6 : f32
    %45 = vector.broadcast %cst_24 : f32 to vector<1x128xf32>
    %46 = arith.addf %42, %45 : vector<1x128xf32>
    %47 = math.rsqrt %46 : vector<1x128xf32>
    %48 = vector.broadcast %47 : vector<1x128xf32> to vector<64x128xf32>
    %49 = arith.mulf %44, %48 : vector<64x128xf32>
    %cst_25 = arith.constant 0.000000e+00 : f32
    %50 = vector.broadcast %cst_25 : f32 to vector<64x128xf32>
    %51 = arith.cmpf oge, %49, %50 : vector<64x128xf32>
    %cst_26 = arith.constant 2.000000e-01 : f32
    %52 = vector.broadcast %cst_26 : f32 to vector<64x128xf32>
    %53 = arith.mulf %52, %49 : vector<64x128xf32>
    %54 = arith.select %51, %49, %53 : vector<64x128xi1>, vector<64x128xf32>
    %55 = arith.truncf %54 : vector<64x128xf32> to vector<64x128xbf16>
    %c0_27 = arith.constant 0 : index
    %c0_28 = arith.constant 0 : index
    %c0_29 = arith.constant 0 : index
    %56 = vector.load %arg6[%c0_27, %c0_28, %c0_29] : memref<1x64x128xbf16, #tpu.memory_space<vmem>>, vector<1x64x128xbf16>
    %57 = vector.shape_cast %56 : vector<1x64x128xbf16> to vector<64x128xbf16>
    %58 = vector.shape_cast %55 : vector<64x128xbf16> to vector<1x64x128xbf16>
    tpu.vector_store %arg6[%c0_27, %c0_28, %c0_29], %58 {strides = array<i32>} : memref<1x64x128xbf16, #tpu.memory_space<vmem>>, vector<1x64x128xbf16>,
    return
  }
  func.func @transform_0(%arg0: i32, %arg1: i32, %arg2: i32) -> (i32, i32, i32, i32) {
    %c0_i32 = arith.constant 0 : i32
    %c0_i32_0 = arith.constant 0 : i32
    %c0_i32_1 = arith.constant 0 : i32
    %c0_i32_2 = arith.constant 0 : i32
    return %arg0, %c0_i32, %c0_i32_0, %c0_i32_1 : i32, i32, i32, i32
  }
  func.func @transform_1(%arg0: i32, %arg1: i32, %arg2: i32) -> (i32, i32) {
    %c0_i32 = arith.constant 0 : i32
    %c0_i32_0 = arith.constant 0 : i32
    return %c0_i32, %arg1 : i32, i32
  }
  func.func @transform_2(%arg0: i32, %arg1: i32, %arg2: i32) -> (i32, i32) {
    %c0_i32 = arith.constant 0 : i32
    %c0_i32_0 = arith.constant 0 : i32
    return %c0_i32, %arg1 : i32, i32
  }
  func.func @transform_3(%arg0: i32, %arg1: i32, %arg2: i32) -> (i32, i32, i32) {
    %c0_i32 = arith.constant 0 : i32
    return %arg0, %arg2, %arg1 : i32, i32, i32
  }
}

</mosaic_0001>

<llo_original>
// kernel: downsample.1
$region0: #{downsample.1}
  #allocation0 [shape = 'u32[]', space=smem, size = 0x4, offset = 0x4, fixed_abs, tag = 'smem constant byte address 0x4 - core index']
  #allocation1 [shape = 'u32[144,128]{1,0:T(1,128)}', space=vmem, size = 0x12000, scoped, tag = 'internal scratch']
  %s0 = inlined_call_operand.vmem [shape: bf16[2,9,9,16], index: 0, kind: input, shape index: {}]
  %s1 = inlined_call_operand.vmem [shape: bf16[64,128], index: 1, kind: input, shape index: {}]
  %s2 = inlined_call_operand.vmem [shape: f32[1,128], index: 2, kind: input, shape index: {}]
  %s3 = inlined_call_operand.vmem [shape: bf16[2,64,128], index: 3, kind: output, shape index: {}]
  %s4 = sld [smem:[#allocation0]]
  $region45: #{downsample.1} parent=0
    _
  %s6 = ssub.s32 1, %s4
  %s7 = scalar_select 0, %s6, %s4
  loop: start=0, step=1, limit=4
  $region2: #{downsample.1} parent=0 // loop_pre_header
    _
  $region3: #{downsample.1} parent=0 // loop_header
    %s9 = sphi 0, %s13
    %p10 = scmp.ge.s32.totalorder %s9, 4
    %s16 = sphi 0, %s35
    %s17 = sphi 0, %s31
    %s18 = sphi 0, %s27
    %s19 = sphi 0, %s16
    %s20 = sphi 0, %s17
    %s21 = sphi 0, %s18
    %s22 = sphi 0, %s19
    %s23 = sphi 0, %s20
    %s24 = sphi 0, %s21
    %s38 = sphi 0, %s40
    %s41 = sphi 0, %s38
    %s42 = sphi 0, %s41
    %s58 = sphi 0, %s42
    %s64 = sphi 0, %s66
    %s67 = sphi 0, %s64
    %s68 = sphi 0, %s67
    %s84 = sphi 0, %s68
    %s90 = sphi 0, %s92
    %s93 = sphi 0, %s90
    %s94 = sphi 0, %s93
    %s110 = sphi 0, %s94
    %s120 = sphi 0, %s122
    %s123 = sphi 0, %s120
    %s124 = sphi 0, %s123
    %s140 = sphi 0, %s124
  $region4: #{downsample.1} parent=0 // loop_header_branch
    %12 = sbr.rel (%p10) target = $region8
  $region5: #{downsample.1} parent=0 // loop_body
    %s14 = ssub.s32 %s9, 1
    %s15 = ssub.s32 %s9, 2
    %s25 = sadd.s32 1, %s18
    %p26 = scmp.ge.s32.totalorder %s25, 1
    %s27 = scalar_select %p26, 0, %s25
    %s28 = sadd.s32 1, %s17
    %s29 = scalar_select %p26, %s28, %s17
    %p30 = scmp.ge.s32.totalorder %s29, 1
    %s31 = scalar_select %p30, 0, %s29
    %s32 = sadd.s32 1, %s16
    %s33 = scalar_select %p30, %s32, %s16
    %p34 = scmp.ge.s32.totalorder %s33, 2
    %s35 = scalar_select %p34, 0, %s33
    %s36 = ssub.s32 %s16, %s35
    %p37 = scmp.eq.s32.totalorder %s36, 0
    %s39 = sadd.s32 %s38, 1
    %s40 = scalar_select %p37, %s38, %s39
    %p43 = pneg %p37
    %p44 = scmp.eq.s32.totalorder %s9, 1
    %p45 = por %p43, %p44
    %p46 = scmp.ne.s32.totalorder %s38, %s41
    %p47 = scmp.eq.s32.totalorder %s9, 0
    %p48 = por %p46, %p47
    %p49 = scmp.ne.s32.totalorder %s38, %s41
    %p50 = scmp.eq.s32.totalorder %s14, 1
    %p51 = por %p49, %p50
    %p52 = scmp.ne.s32.totalorder %s41, %s42
    %p53 = scmp.eq.s32.totalorder %s14, 0
    %p54 = por %p52, %p53
    %p55 = scmp.ne.s32.totalorder %s41, %s42
    %p56 = scmp.eq.s32.totalorder %s15, 1
    %p57 = por %p55, %p56
    %p59 = scmp.ne.s32.totalorder %s42, %s58
    %p60 = scmp.eq.s32.totalorder %s15, 0
    %p61 = por %p59, %p60
    %s62 = ssub.s32 %s17, %s31
    %p63 = scmp.eq.s32.totalorder %s62, 0
    %s65 = sadd.s32 %s64, 1
    %s66 = scalar_select %p63, %s64, %s65
    %p69 = pneg %p63
    %p70 = scmp.eq.s32.totalorder %s9, 1
    %p71 = por %p69, %p70
    %p72 = scmp.ne.s32.totalorder %s64, %s67
    %p73 = scmp.eq.s32.totalorder %s9, 0
    %p74 = por %p72, %p73
    %p75 = scmp.ne.s32.totalorder %s64, %s67
    %p76 = scmp.eq.s32.totalorder %s14, 1
    %p77 = por %p75, %p76
    %p78 = scmp.ne.s32.totalorder %s67, %s68
    %p79 = scmp.eq.s32.totalorder %s14, 0
    %p80 = por %p78, %p79
    %p81 = scmp.ne.s32.totalorder %s67, %s68
    %p82 = scmp.eq.s32.totalorder %s15, 1
    %p83 = por %p81, %p82
    %p85 = scmp.ne.s32.totalorder %s68, %s84
    %p86 = scmp.eq.s32.totalorder %s15, 0
    %p87 = por %p85, %p86
    %s88 = ssub.s32 %s17, %s31
    %p89 = scmp.eq.s32.totalorder %s88, 0
    %s91 = sadd.s32 %s90, 1
    %s92 = scalar_select %p89, %s90, %s91
    %p95 = pneg %p89
    %p96 = scmp.eq.s32.totalorder %s9, 1
    %p97 = por %p95, %p96
    %p98 = scmp.ne.s32.totalorder %s90, %s93
    %p99 = scmp.eq.s32.totalorder %s9, 0
    %p100 = por %p98, %p99
    %p101 = scmp.ne.s32.totalorder %s90, %s93
    %p102 = scmp.eq.s32.totalorder %s14, 1
    %p103 = por %p101, %p102
    %p104 = scmp.ne.s32.totalorder %s93, %s94
    %p105 = scmp.eq.s32.totalorder %s14, 0
    %p106 = por %p104, %p105
    %p107 = scmp.ne.s32.totalorder %s93, %s94
    %p108 = scmp.eq.s32.totalorder %s15, 1
    %p109 = por %p107, %p108
    %p111 = scmp.ne.s32.totalorder %s94, %s110
    %p112 = scmp.eq.s32.totalorder %s15, 0
    %p113 = por %p111, %p112
    %s114 = ssub.s32 %s16, %s35
    %s115 = ssub.s32 %s18, %s27
    %s116 = sor.u32 %s114, %s115
    %s117 = ssub.s32 %s17, %s31
    %s118 = sor.u32 %s116, %s117
    %p119 = scmp.eq.s32.totalorder %s118, 0
    %s121 = sadd.s32 %s120, 1
    %s122 = scalar_select %p119, %s120, %s121
    %p125 = pneg %p119
    %p126 = scmp.eq.s32.totalorder %s9, 1
    %p127 = por %p125, %p126
    %p128 = scmp.ne.s32.totalorder %s120, %s123
    %p129 = scmp.eq.s32.totalorder %s9, 0
    %p130 = por %p128, %p129
    %p131 = scmp.ne.s32.totalorder %s120, %s123
    %p132 = scmp.eq.s32.totalorder %s14, 1
    %p133 = por %p131, %p132
    %p134 = scmp.ne.s32.totalorder %s123, %s124
    %p135 = scmp.eq.s32.totalorder %s14, 0
    %p136 = por %p134, %p135
    %p137 = scmp.ne.s32.totalorder %s123, %s124
    %p138 = scmp.eq.s32.totalorder %s15, 1
    %p139 = por %p137, %p138
    %p141 = scmp.ne.s32.totalorder %s124, %s140
    %p142 = scmp.eq.s32.totalorder %s15, 0
    %p143 = por %p141, %p142
    %p144 = scmp.le.s32.totalorder 1, %s9
    %p145 = scmp.lt.s32.totalorder %s9, 3
    %p146 = pnand %p144, %p145
    %p147 = pneg %p146
    // Predicated region
    $region9: #{downsample.1} parent=5 // pred_check
      _
    $region10: #{downsample.1} parent=5 // pred_check_branch
      %149 = sbr.rel (%p146) target = $region12
    $region11: #{downsample.1} parent=5 // pred_region
      %s150 = ssub.s32 %s9, 1
      // Predicated region
      $region13: #{downsample.1} parent=11 // pred_check
        %p151 = pneg %p80
      $region14: #{downsample.1} parent=11 // pred_check_branch
        %153 = sbr.rel (%p151) target = $region16
      $region15: #{downsample.1} parent=11 // pred_region
        %p154 = scmp.lt.s32.totalorder %s20, 0
        %s155 = scalar_select %p154, %s20, 0
        %s156 = smul.addr %s155, 4
        %s157 = scalar_lea.vmem %s1, %s156
      $region16: #{downsample.1} parent=11 // pred_fallthru
        _
      // Predicated region
      $region17: #{downsample.1} parent=11 // pred_check
        %p158 = pneg %p106
      $region18: #{downsample.1} parent=11 // pred_check_branch
        %160 = sbr.rel (%p158) target = $region20
      $region19: #{downsample.1} parent=11 // pred_region
        %p161 = scmp.lt.s32.totalorder %s20, 0
        %s162 = scalar_select %p161, %s20, 0
        %s163 = scalar_lea.vmem %s2, %s162
      $region20: #{downsample.1} parent=11 // pred_fallthru
        _
    $region12: #{downsample.1} parent=5 // pred_fallthru
      _
    %p164 = scmp.lt.s32.totalorder %s9, 2
    // Predicated region
    $region21: #{downsample.1} parent=5 // pred_check
      %p165 = pneg %p164
    $region22: #{downsample.1} parent=5 // pred_check_branch
      %167 = sbr.rel (%p165) target = $region24
    $region23: #{downsample.1} parent=5 // pred_region
      // Predicated region
      $region25: #{downsample.1} parent=23 // pred_check
        %p168 = pneg %p48
      $region26: #{downsample.1} parent=23 // pred_check_branch
        %170 = sbr.rel (%p168) target = $region28
      $region27: #{downsample.1} parent=23 // pred_region
        %p171 = scmp.lt.s32.totalorder %s16, 1
        %s172 = scalar_select %p171, %s16, 1
        %s173 = smul.addr %s172, 18
        %s174 = smul.addr %s173, 4
        %s175 = scalar_lea.vmem %s0, %s174
      $region28: #{downsample.1} parent=23 // pred_fallthru
        _
    $region24: #{downsample.1} parent=5 // pred_fallthru
      _
    %p176 = scmp.le.s32.totalorder 1, %s9
    %p177 = scmp.lt.s32.totalorder %s9, 3
    %p178 = pnand %p176, %p177
    %p179 = pneg %p178
    // Predicated region
    $region29: #{downsample.1} parent=5 // pred_check
      _
    $region30: #{downsample.1} parent=5 // pred_check_branch
      %181 = sbr.rel (%p178) target = $region32
    $region31: #{downsample.1} parent=5 // pred_region
      %s182 = ssub.s32 %s9, 1
      %p183 = scmp.lt.s32.totalorder %s19, 1
      %s184 = scalar_select %p183, %s19, 1
      %s185 = smul.addr %s184, 18
      %s186 = smul.addr %s185, 4
      %s187 = scalar_lea.vmem %s0, %s186
      %p188 = pneg %p54
      %p189 = pneg %p51
      %p190 = scmp.lt.s32.totalorder %s20, 0
      %s191 = scalar_select %p190, %s20, 0
      %s192 = smul.addr %s191, 4
      %s193 = scalar_lea.vmem %s1, %s192
      %p194 = pneg %p80
      %p195 = pneg %p77
      %p196 = scmp.lt.s32.totalorder %s20, 0
      %s197 = scalar_select %p196, %s20, 0
      %s198 = scalar_lea.vmem %s2, %s197
      %p199 = pneg %p106
      %p200 = pneg %p103
      %p201 = pneg %p136
      %p202 = pneg %p133
      %s203 = smul.u32 8, %s21
      %p204 = scmp.lt.s32.totalorder %s19, 1
      %s205 = scalar_select %p204, %s19, 1
      %p206 = scmp.lt.s32.totalorder %s203, 7
      %s207 = scalar_select %p206, %s203, 7
      %p208 = scmp.lt.s32.totalorder %s20, 0
      %s209 = scalar_select %p208, %s20, 0
      %s210 = sadd.s32 %s209, %s207
      %s211 = smul.addr %s205, 8
      %s212 = sadd.s32 %s210, %s211
      %s213 = smul.addr %s212, 4
      %s214 = scalar_lea.vmem %s3, %s213
      %p215 = scmp.lt.s32.totalorder %s19, 1
      %s216 = scalar_select %p215, %s19, 1
      %s217 = smul.addr %s216, 18
      %s218 = smul.addr %s217, 4
      %s219 = scalar_lea.vmem %s0, %s218
      %p220 = scmp.lt.s32.totalorder %s20, 0
      %s221 = scalar_select %p220, %s20, 0
      %s222 = smul.addr %s221, 4
      %s223 = scalar_lea.vmem %s1, %s222
      %p224 = scmp.lt.s32.totalorder %s20, 0
      %s225 = scalar_select %p224, %s20, 0
      %s226 = scalar_lea.vmem %s2, %s225
      %s227 = smul.u32 8, %s21
      %p228 = scmp.lt.s32.totalorder %s19, 1
      %s229 = scalar_select %p228, %s19, 1
      %p230 = scmp.lt.s32.totalorder %s227, 7
      %s231 = scalar_select %p230, %s227, 7
      %p232 = scmp.lt.s32.totalorder %s20, 0
      %s233 = scalar_select %p232, %s20, 0
      %s234 = sadd.s32 %s233, %s231
      %s235 = smul.addr %s229, 8
      %s236 = sadd.s32 %s234, %s235
      %s237 = smul.addr %s236, 4
      %s238 = scalar_lea.vmem %s3, %s237
      %s239 = smul.u32 8, %s21
      %s241 = smul.u32 %s21, 8
      %s242 = smul.u32 %s241, 2
      %s243 = smul.addr %s242, 4
      %s244 = scalar_lea.vmem %s219, %s243
      %v245 = vld [vmem:[%s244] sm:$0xf]
      %v246 = vld [vmem:[%s244 + $0x8] sm:$0xf]
      %v247 = vld [vmem:[%s244 + $0x10] sm:$0xf]
      %v248 = vld [vmem:[%s244 + $0x18] sm:$0xf]
      %v249 = vld [vmem:[%s244 + $0x20] sm:$0xf]
      %v250 = vld [vmem:[%s244 + $0x28] sm:$0xf]
      %v251 = vld [vmem:[%s244 + $0x30] sm:$0xf]
      %v252 = vld [vmem:[%s244 + $0x38] sm:$0xf]
      %v253 = vld [vmem:[%s244 + $0x4] sm:$0x1]
      %v254 = vld [vmem:[%s244 + $0xc] sm:$0x1]
      %v255 = vld [vmem:[%s244 + $0x14] sm:$0x1]
      %v256 = vld [vmem:[%s244 + $0x1c] sm:$0x1]
      %v257 = vld [vmem:[%s244 + $0x24] sm:$0x1]
      %v258 = vld [vmem:[%s244 + $0x2c] sm:$0x1]
      %v259 = vld [vmem:[%s244 + $0x34] sm:$0x1]
      %v260 = vld [vmem:[%s244 + $0x3c] sm:$0x1]
      %vm261 = vsmask.f32 3328
      %vm262 = vsmask.f32 7440
      %vm263 = vmor %vm261, %vm262
      %v265 = vshrl.u32 %v245, 16
      %v267 = vrot.slane %v265, 4
      %v268 = vshll.u32 %v245, 16
      %v270 = vrot.slane %v268, 5
      %v271 = vor.u32 %v267, %v270
      %v272 = vrot.slane %v271, 4
      %v274 = vshll.u32 %v253, 16
      %v276 = vrot.slane %v274, 5
      %v277 = vsel %vm263, %v272, %v276
      %v279 = vshrl.u32 %v246, 16
      %v281 = vrot.slane %v279, 4
      %v282 = vshll.u32 %v246, 16
      %v284 = vrot.slane %v282, 5
      %v285 = vor.u32 %v281, %v284
      %v286 = vrot.slane %v285, 4
      %v288 = vshll.u32 %v254, 16
      %v290 = vrot.slane %v288, 5
      %v291 = vsel %vm263, %v286, %v290
      %v293 = vshrl.u32 %v247, 16
      %v295 = vrot.slane %v293, 4
      %v296 = vshll.u32 %v247, 16
      %v298 = vrot.slane %v296, 5
      %v299 = vor.u32 %v295, %v298
      %v300 = vrot.slane %v299, 4
      %v302 = vshll.u32 %v255, 16
      %v304 = vrot.slane %v302, 5
      %v305 = vsel %vm263, %v300, %v304
      %v307 = vshrl.u32 %v248, 16
      %v309 = vrot.slane %v307, 4
      %v310 = vshll.u32 %v248, 16
      %v312 = vrot.slane %v310, 5
      %v313 = vor.u32 %v309, %v312
      %v314 = vrot.slane %v313, 4
      %v316 = vshll.u32 %v256, 16
      %v318 = vrot.slane %v316, 5
      %v319 = vsel %vm263, %v314, %v318
      %v321 = vshrl.u32 %v249, 16
      %v323 = vrot.slane %v321, 4
      %v324 = vshll.u32 %v249, 16
      %v326 = vrot.slane %v324, 5
      %v327 = vor.u32 %v323, %v326
      %v328 = vrot.slane %v327, 4
      %v330 = vshll.u32 %v257, 16
      %v332 = vrot.slane %v330, 5
      %v333 = vsel %vm263, %v328, %v332
      %v335 = vshrl.u32 %v250, 16
      %v337 = vrot.slane %v335, 4
      %v338 = vshll.u32 %v250, 16
      %v340 = vrot.slane %v338, 5
      %v341 = vor.u32 %v337, %v340
      %v342 = vrot.slane %v341, 4
      %v344 = vshll.u32 %v258, 16
      %v346 = vrot.slane %v344, 5
      %v347 = vsel %vm263, %v342, %v346
      %v349 = vshrl.u32 %v251, 16
      %v351 = vrot.slane %v349, 4
      %v352 = vshll.u32 %v251, 16
      %v354 = vrot.slane %v352, 5
      %v355 = vor.u32 %v351, %v354
      %v356 = vrot.slane %v355, 4
      %v358 = vshll.u32 %v259, 16
      %v360 = vrot.slane %v358, 5
      %v361 = vsel %vm263, %v356, %v360
      %v363 = vshrl.u32 %v252, 16
      %v365 = vrot.slane %v363, 4
      %v366 = vshll.u32 %v252, 16
      %v368 = vrot.slane %v366, 5
      %v369 = vor.u32 %v365, %v368
      %v370 = vrot.slane %v369, 4
      %v372 = vshll.u32 %v260, 16
      %v374 = vrot.slane %v372, 5
      %v375 = vsel %vm263, %v370, %v374
      %s376 = sadd.s32 %s241, 1
      %s377 = smul.u32 %s376, 2
      %s378 = smul.addr %s377, 4
      %s379 = scalar_lea.vmem %s219, %s378
      %v380 = vld [vmem:[%s379] sm:$0xf]
      %v381 = vld [vmem:[%s379 + $0x8] sm:$0xf]
      %v382 = vld [vmem:[%s379 + $0x10] sm:$0xf]
      %v383 = vld [vmem:[%s379 + $0x18] sm:$0xf]
      %v384 = vld [vmem:[%s379 + $0x20] sm:$0xf]
      %v385 = vld [vmem:[%s379 + $0x28] sm:$0xf]
      %v386 = vld [vmem:[%s379 + $0x30] sm:$0xf]
      %v387 = vld [vmem:[%s379 + $0x38] sm:$0xf]
      %v388 = vld [vmem:[%s379 + $0x4] sm:$0x1]
      %v389 = vld [vmem:[%s379 + $0xc] sm:$0x1]
      %v390 = vld [vmem:[%s379 + $0x14] sm:$0x1]
      %v391 = vld [vmem:[%s379 + $0x1c] sm:$0x1]
      %v392 = vld [vmem:[%s379 + $0x24] sm:$0x1]
      %v393 = vld [vmem:[%s379 + $0x2c] sm:$0x1]
      %v394 = vld [vmem:[%s379 + $0x34] sm:$0x1]
      %v395 = vld [vmem:[%s379 + $0x3c] sm:$0x1]
      %v397 = vshrl.u32 %v380, 16
      %v399 = vrot.slane %v397, 4
      %v400 = vshll.u32 %v380, 16
      %v402 = vrot.slane %v400, 5
      %v403 = vor.u32 %v399, %v402
      %v404 = vrot.slane %v403, 4
      %v406 = vshll.u32 %v388, 16
      %v408 = vrot.slane %v406, 5
      %v409 = vsel %vm263, %v404, %v408
      %v411 = vshrl.u32 %v381, 16
      %v413 = vrot.slane %v411, 4
      %v414 = vshll.u32 %v381, 16
      %v416 = vrot.slane %v414, 5
      %v417 = vor.u32 %v413, %v416
      %v418 = vrot.slane %v417, 4
      %v420 = vshll.u32 %v389, 16
      %v422 = vrot.slane %v420, 5
      %v423 = vsel %vm263, %v418, %v422
      %v425 = vshrl.u32 %v382, 16
      %v427 = vrot.slane %v425, 4
      %v428 = vshll.u32 %v382, 16
      %v430 = vrot.slane %v428, 5
      %v431 = vor.u32 %v427, %v430
      %v432 = vrot.slane %v431, 4
      %v434 = vshll.u32 %v390, 16
      %v436 = vrot.slane %v434, 5
      %v437 = vsel %vm263, %v432, %v436
      %v439 = vshrl.u32 %v383, 16
      %v441 = vrot.slane %v439, 4
      %v442 = vshll.u32 %v383, 16
      %v444 = vrot.slane %v442, 5
      %v445 = vor.u32 %v441, %v444
      %v446 = vrot.slane %v445, 4
      %v448 = vshll.u32 %v391, 16
      %v450 = vrot.slane %v448, 5
      %v451 = vsel %vm263, %v446, %v450
      %v453 = vshrl.u32 %v384, 16
      %v455 = vrot.slane %v453, 4
      %v456 = vshll.u32 %v384, 16
      %v458 = vrot.slane %v456, 5
      %v459 = vor.u32 %v455, %v458
      %v460 = vrot.slane %v459, 4
      %v462 = vshll.u32 %v392, 16
      %v464 = vrot.slane %v462, 5
      %v465 = vsel %vm263, %v460, %v464
      %v467 = vshrl.u32 %v385, 16
      %v469 = vrot.slane %v467, 4
      %v470 = vshll.u32 %v385, 16
      %v472 = vrot.slane %v470, 5
      %v473 = vor.u32 %v469, %v472
      %v474 = vrot.slane %v473, 4
      %v476 = vshll.u32 %v393, 16
      %v478 = vrot.slane %v476, 5
      %v479 = vsel %vm263, %v474, %v478
      %v481 = vshrl.u32 %v386, 16
      %v483 = vrot.slane %v481, 4
      %v484 = vshll.u32 %v386, 16
      %v486 = vrot.slane %v484, 5
      %v487 = vor.u32 %v483, %v486
      %v488 = vrot.slane %v487, 4
      %v490 = vshll.u32 %v394, 16
      %v492 = vrot.slane %v490, 5
      %v493 = vsel %vm263, %v488, %v492
      %v495 = vshrl.u32 %v387, 16
      %v497 = vrot.slane %v495, 4
      %v498 = vshll.u32 %v387, 16
      %v500 = vrot.slane %v498, 5
      %v501 = vor.u32 %v497, %v500
      %v502 = vrot.slane %v501, 4
      %v504 = vshll.u32 %v395, 16
      %v506 = vrot.slane %v504, 5
      %v507 = vsel %vm263, %v502, %v506
      %v508 = vld [vmem:[%s223] sm:$0xf]
      %v509 = vld [vmem:[%s223 + $0x4] sm:$0xf]
      %v510 = vld [vmem:[%s223 + $0x8] sm:$0xf]
      %v511 = vld [vmem:[%s223 + $0xc] sm:$0xf]
      %v512 = vunpack.c.l.b16 %v277
      %v513 = vunpack.c.l.b16 %v291
      %v514 = vunpack.c.l.b16 %v305
      %v515 = vunpack.c.l.b16 %v319
      %v516 = vunpack.c.l.b16 %v333
      %v517 = vunpack.c.l.b16 %v347
      %v518 = vunpack.c.l.b16 %v361
      %v519 = vunpack.c.l.b16 %v375
      %v520 = vpack.c.b16 %v513, %v512
      %v521 = vpack.c.b16 %v515, %v514
      %v522 = vpack.c.b16 %v517, %v516
      %v523 = vpack.c.b16 %v519, %v518
      %v526 = vunpack.c.l.b16 %v510
      %v527 = vunpack.c.l.b16 %v511
      %v528 = vpack.c.b16 %v527, %v526
      %vm530 = vcmask 130048
      %v532 = vsel %vm530, %v520, 0
      %v535 = vsel %vm530, %v521, 0
      %v538 = vsel %vm530, %v522, 0
      %v541 = vsel %vm530, %v523, 0
      %543 = vmatprep.subr.bf16.mxu0 0
      %544 = vmatpush1.bf16.msra.mxu0 0
      %545 = vmatprep.subr.bf16.mxu0 0
      %546 = vmatpush1.bf16.msra.mxu0 0
      %547 = vmatprep.subr.bf16.mxu0 0
      %548 = vmatpush1.bf16.msra.mxu0 0
      %549 = vmatprep.subr.bf16.mxu0 0
      %550 = vmatpush1.bf16.msra.mxu0 0
      %551 = vmatprep.subr.bf16.mxu0 0
      %552 = vmatpush1.bf16.msra.mxu0 0
      %553 = vmatprep.subr.bf16.mxu0 0
      %554 = vmatpush1.bf16.msra.mxu0 0
      %555 = vmatprep.subr.bf16.mxu0 0
      %556 = vmatpush1.bf16.msra.mxu0 0
      %557 = vmatprep.subr.bf16.mxu0 0
      %558 = vmatpush1.bf16.msra.mxu0 %v528
      %559 = vmatprep.subr.bf16.mxu0 0
      %560 = vmatpush2.bf16.msra.mxu0 0
      %561 = vmatprep.subr.bf16.mxu0 0
      %562 = vmatpush2.bf16.msra.mxu0 0
      %563 = vmatprep.subr.bf16.mxu0 0
      %564 = vmatpush2.bf16.msra.mxu0 0
      %565 = vmatprep.subr.bf16.mxu0 0
      %566 = vmatpush2.bf16.msra.mxu0 0
      %567 = vmatprep.subr.bf16.mxu0 0
      %568 = vmatpush2.bf16.msra.mxu0 0
      %569 = vmatprep.subr.bf16.mxu0 0
      %570 = vmatpush2.bf16.msra.mxu0 0
      %571 = vmatprep.subr.bf16.mxu0 0
      %572 = vmatpush2.bf16.msra.mxu0 0
      %573 = vmatprep.subr.bf16.mxu0 0
      %574 = vmatpush2.bf16.msra.mxu0 0
      %575 = vmatprep.mubr.bf16.mxu0 0
      %576 = vmatmul.mubr.bf16.gmra.mxu0 %v532
      %v577 = vpop.f32.mrf.mxu0
      %v578 = vadd.f32 0.0, %v577
      %v579 = vpop.f32.mrf.mxu0
      %v580 = vpop.f32.mrf.mxu0
      %v581 = vadd.f32 0.0, %v580
      %v582 = vpop.f32.mrf.mxu0
      %583 = vmatprep.mubr.bf16.mxu0 0
      %584 = vmatmul.mubr.bf16.gmra.mxu0 %v535
      %v585 = vpop.f32.mrf.mxu0
      %v586 = vadd.f32 0.0, %v585
      %v587 = vpop.f32.mrf.mxu0
      %v588 = vpop.f32.mrf.mxu0
      %v589 = vadd.f32 0.0, %v588
      %v590 = vpop.f32.mrf.mxu0
      %591 = vmatprep.mubr.bf16.mxu0 0
      %592 = vmatmul.mubr.bf16.gmra.mxu0 %v538
      %v593 = vpop.f32.mrf.mxu0
      %v594 = vadd.f32 0.0, %v593
      %v595 = vpop.f32.mrf.mxu0
      %v596 = vpop.f32.mrf.mxu0
      %v597 = vadd.f32 0.0, %v596
      %v598 = vpop.f32.mrf.mxu0
      %599 = vmatprep.mubr.bf16.mxu0 0
      %600 = vmatmul.mubr.bf16.gmra.mxu0 %v541
      %v601 = vpop.f32.mrf.mxu0
      %v602 = vadd.f32 0.0, %v601
      %v603 = vpop.f32.mrf.mxu0
      %v604 = vpop.f32.mrf.mxu0
      %v605 = vadd.f32 0.0, %v604
      %v606 = vpop.f32.mrf.mxu0
      %607 = vdwg.mxu0
      %v616 = vunpack.c.l.b16 %v245
      %v617 = vunpack.c.l.b16 %v246
      %v618 = vunpack.c.l.b16 %v247
      %v619 = vunpack.c.l.b16 %v248
      %v620 = vunpack.c.l.b16 %v249
      %v621 = vunpack.c.l.b16 %v250
      %v622 = vunpack.c.l.b16 %v251
      %v623 = vunpack.c.l.b16 %v252
      %v624 = vpack.c.b16 %v617, %v616
      %v625 = vpack.c.b16 %v619, %v618
      %v626 = vpack.c.b16 %v621, %v620
      %v627 = vpack.c.b16 %v623, %v622
      %v630 = vunpack.c.l.b16 %v508
      %v631 = vunpack.c.l.b16 %v509
      %v632 = vpack.c.b16 %v631, %v630
      %v635 = vsel %vm530, %v624, 0
      %v638 = vsel %vm530, %v625, 0
      %v641 = vsel %vm530, %v626, 0
      %v644 = vsel %vm530, %v627, 0
      %646 = vmatprep.subr.bf16.mxu0 0
      %647 = vmatpush1.bf16.msra.mxu0 0
      %648 = vmatprep.subr.bf16.mxu0 0
      %649 = vmatpush1.bf16.msra.mxu0 0
      %650 = vmatprep.subr.bf16.mxu0 0
      %651 = vmatpush1.bf16.msra.mxu0 0
      %652 = vmatprep.subr.bf16.mxu0 0
      %653 = vmatpush1.bf16.msra.mxu0 0
      %654 = vmatprep.subr.bf16.mxu0 0
      %655 = vmatpush1.bf16.msra.mxu0 0
      %656 = vmatprep.subr.bf16.mxu0 0
      %657 = vmatpush1.bf16.msra.mxu0 0
      %658 = vmatprep.subr.bf16.mxu0 0
      %659 = vmatpush1.bf16.msra.mxu0 0
      %660 = vmatprep.subr.bf16.mxu0 0
      %661 = vmatpush1.bf16.msra.mxu0 %v632
      %662 = vmatprep.subr.bf16.mxu0 0
      %663 = vmatpush2.bf16.msra.mxu0 0
      %664 = vmatprep.subr.bf16.mxu0 0
      %665 = vmatpush2.bf16.msra.mxu0 0
      %666 = vmatprep.subr.bf16.mxu0 0
      %667 = vmatpush2.bf16.msra.mxu0 0
      %668 = vmatprep.subr.bf16.mxu0 0
      %669 = vmatpush2.bf16.msra.mxu0 0
      %670 = vmatprep.subr.bf16.mxu0 0
      %671 = vmatpush2.bf16.msra.mxu0 0
      %672 = vmatprep.subr.bf16.mxu0 0
      %673 = vmatpush2.bf16.msra.mxu0 0
      %674 = vmatprep.subr.bf16.mxu0 0
      %675 = vmatpush2.bf16.msra.mxu0 0
      %676 = vmatprep.subr.bf16.mxu0 0
      %677 = vmatpush2.bf16.msra.mxu0 0
      %678 = vmatprep.mubr.bf16.mxu0 0
      %679 = vmatmul.mubr.bf16.gmra.mxu0 %v635
      %v680 = vpop.f32.mrf.mxu0
      %v681 = vadd.f32 %v578, %v680
      %v682 = vpop.f32.mrf.mxu0
      %v683 = vpop.f32.mrf.mxu0
      %v684 = vadd.f32 %v581, %v683
      %v685 = vpop.f32.mrf.mxu0
      %686 = vmatprep.mubr.bf16.mxu0 0
      %687 = vmatmul.mubr.bf16.gmra.mxu0 %v638
      %v688 = vpop.f32.mrf.mxu0
      %v689 = vadd.f32 %v586, %v688
      %v690 = vpop.f32.mrf.mxu0
      %v691 = vpop.f32.mrf.mxu0
      %v692 = vadd.f32 %v589, %v691
      %v693 = vpop.f32.mrf.mxu0
      %694 = vmatprep.mubr.bf16.mxu0 0
      %695 = vmatmul.mubr.bf16.gmra.mxu0 %v641
      %v696 = vpop.f32.mrf.mxu0
      %v697 = vadd.f32 %v594, %v696
      %v698 = vpop.f32.mrf.mxu0
      %v699 = vpop.f32.mrf.mxu0
      %v700 = vadd.f32 %v597, %v699
      %v701 = vpop.f32.mrf.mxu0
      %702 = vmatprep.mubr.bf16.mxu0 0
      %703 = vmatmul.mubr.bf16.gmra.mxu0 %v644
      %v704 = vpop.f32.mrf.mxu0
      %v705 = vadd.f32 %v602, %v704
      %v706 = vpop.f32.mrf.mxu0
      %v707 = vpop.f32.mrf.mxu0
      %v708 = vadd.f32 %v605, %v707
      %v709 = vpop.f32.mrf.mxu0
      %710 = vdwg.mxu0
      %v711 = vld [vmem:[%s223 + $0x10] sm:$0xf]
      %v712 = vld [vmem:[%s223 + $0x14] sm:$0xf]
      %v721 = vunpack.c.l.b16 %v380
      %v722 = vunpack.c.l.b16 %v381
      %v723 = vunpack.c.l.b16 %v382
      %v724 = vunpack.c.l.b16 %v383
      %v725 = vunpack.c.l.b16 %v384
      %v726 = vunpack.c.l.b16 %v385
      %v727 = vunpack.c.l.b16 %v386
      %v728 = vunpack.c.l.b16 %v387
      %v729 = vpack.c.b16 %v722, %v721
      %v730 = vpack.c.b16 %v724, %v723
      %v731 = vpack.c.b16 %v726, %v725
      %v732 = vpack.c.b16 %v728, %v727
      %v735 = vunpack.c.l.b16 %v711
      %v736 = vunpack.c.l.b16 %v712
      %v737 = vpack.c.b16 %v736, %v735
      %v740 = vsel %vm530, %v729, 0
      %v743 = vsel %vm530, %v730, 0
      %v746 = vsel %vm530, %v731, 0
      %v749 = vsel %vm530, %v732, 0
      %751 = vmatprep.subr.bf16.mxu0 0
      %752 = vmatpush1.bf16.msra.mxu0 0
      %753 = vmatprep.subr.bf16.mxu0 0
      %754 = vmatpush1.bf16.msra.mxu0 0
      %755 = vmatprep.subr.bf16.mxu0 0
      %756 = vmatpush1.bf16.msra.mxu0 0
      %757 = vmatprep.subr.bf16.mxu0 0
      %758 = vmatpush1.bf16.msra.mxu0 0
      %759 = vmatprep.subr.bf16.mxu0 0
      %760 = vmatpush1.bf16.msra.mxu0 0
      %761 = vmatprep.subr.bf16.mxu0 0
      %762 = vmatpush1.bf16.msra.mxu0 0
      %763 = vmatprep.subr.bf16.mxu0 0
      %764 = vmatpush1.bf16.msra.mxu0 0
      %765 = vmatprep.subr.bf16.mxu0 0
      %766 = vmatpush1.bf16.msra.mxu0 %v737
      %767 = vmatprep.subr.bf16.mxu0 0
      %768 = vmatpush2.bf16.msra.mxu0 0
      %769 = vmatprep.subr.bf16.mxu0 0
      %770 = vmatpush2.bf16.msra.mxu0 0
      %771 = vmatprep.subr.bf16.mxu0 0
      %772 = vmatpush2.bf16.msra.mxu0 0
      %773 = vmatprep.subr.bf16.mxu0 0
      %774 = vmatpush2.bf16.msra.mxu0 0
      %775 = vmatprep.subr.bf16.mxu0 0
      %776 = vmatpush2.bf16.msra.mxu0 0
      %777 = vmatprep.subr.bf16.mxu0 0
      %778 = vmatpush2.bf16.msra.mxu0 0
      %779 = vmatprep.subr.bf16.mxu0 0
      %780 = vmatpush2.bf16.msra.mxu0 0
      %781 = vmatprep.subr.bf16.mxu0 0
      %782 = vmatpush2.bf16.msra.mxu0 0
      %783 = vmatprep.mubr.bf16.mxu0 0
      %784 = vmatmul.mubr.bf16.gmra.mxu0 %v740
      %v785 = vpop.f32.mrf.mxu0
      %v786 = vadd.f32 0.0, %v785
      %v787 = vpop.f32.mrf.mxu0
      %v788 = vpop.f32.mrf.mxu0
      %v789 = vadd.f32 0.0, %v788
      %v790 = vpop.f32.mrf.mxu0
      %791 = vmatprep.mubr.bf16.mxu0 0
      %792 = vmatmul.mubr.bf16.gmra.mxu0 %v743
      %v793 = vpop.f32.mrf.mxu0
      %v794 = vadd.f32 0.0, %v793
      %v795 = vpop.f32.mrf.mxu0
      %v796 = vpop.f32.mrf.mxu0
      %v797 = vadd.f32 0.0, %v796
      %v798 = vpop.f32.mrf.mxu0
      %799 = vmatprep.mubr.bf16.mxu0 0
      %800 = vmatmul.mubr.bf16.gmra.mxu0 %v746
      %v801 = vpop.f32.mrf.mxu0
      %v802 = vadd.f32 0.0, %v801
      %v803 = vpop.f32.mrf.mxu0
      %v804 = vpop.f32.mrf.mxu0
      %v805 = vadd.f32 0.0, %v804
      %v806 = vpop.f32.mrf.mxu0
      %807 = vmatprep.mubr.bf16.mxu0 0
      %808 = vmatmul.mubr.bf16.gmra.mxu0 %v749
      %v809 = vpop.f32.mrf.mxu0
      %v810 = vadd.f32 0.0, %v809
      %v811 = vpop.f32.mrf.mxu0
      %v812 = vpop.f32.mrf.mxu0
      %v813 = vadd.f32 0.0, %v812
      %v814 = vpop.f32.mrf.mxu0
      %815 = vdwg.mxu0
      %v816 = vadd.f32 %v681, %v786
      %v817 = vadd.f32 %v684, %v789
      %v818 = vadd.f32 %v689, %v794
      %v819 = vadd.f32 %v692, %v797
      %v820 = vadd.f32 %v697, %v802
      %v821 = vadd.f32 %v700, %v805
      %v822 = vadd.f32 %v705, %v810
      %v823 = vadd.f32 %v708, %v813
      %v824 = vld [vmem:[%s223 + $0x18] sm:$0xf]
      %v825 = vld [vmem:[%s223 + $0x1c] sm:$0xf]
      %v826 = vunpack.c.l.b16 %v409
      %v827 = vunpack.c.l.b16 %v423
      %v828 = vunpack.c.l.b16 %v437
      %v829 = vunpack.c.l.b16 %v451
      %v830 = vunpack.c.l.b16 %v465
      %v831 = vunpack.c.l.b16 %v479
      %v832 = vunpack.c.l.b16 %v493
      %v833 = vunpack.c.l.b16 %v507
      %v834 = vpack.c.b16 %v827, %v826
      %v835 = vpack.c.b16 %v829, %v828
      %v836 = vpack.c.b16 %v831, %v830
      %v837 = vpack.c.b16 %v833, %v832
      %v840 = vunpack.c.l.b16 %v824
      %v841 = vunpack.c.l.b16 %v825
      %v842 = vpack.c.b16 %v841, %v840
      %v845 = vsel %vm530, %v834, 0
      %v848 = vsel %vm530, %v835, 0
      %v851 = vsel %vm530, %v836, 0
      %v854 = vsel %vm530, %v837, 0
      %856 = vmatprep.subr.bf16.mxu0 0
      %857 = vmatpush1.bf16.msra.mxu0 0
      %858 = vmatprep.subr.bf16.mxu0 0
      %859 = vmatpush1.bf16.msra.mxu0 0
      %860 = vmatprep.subr.bf16.mxu0 0
      %861 = vmatpush1.bf16.msra.mxu0 0
      %862 = vmatprep.subr.bf16.mxu0 0
      %863 = vmatpush1.bf16.msra.mxu0 0
      %864 = vmatprep.subr.bf16.mxu0 0
      %865 = vmatpush1.bf16.msra.mxu0 0
      %866 = vmatprep.subr.bf16.mxu0 0
      %867 = vmatpush1.bf16.msra.mxu0 0
      %868 = vmatprep.subr.bf16.mxu0 0
      %869 = vmatpush1.bf16.msra.mxu0 0
      %870 = vmatprep.subr.bf16.mxu0 0
      %871 = vmatpush1.bf16.msra.mxu0 %v842
      %872 = vmatprep.subr.bf16.mxu0 0
      %873 = vmatpush2.bf16.msra.mxu0 0
      %874 = vmatprep.subr.bf16.mxu0 0
      %875 = vmatpush2.bf16.msra.mxu0 0
      %876 = vmatprep.subr.bf16.mxu0 0
      %877 = vmatpush2.bf16.msra.mxu0 0
      %878 = vmatprep.subr.bf16.mxu0 0
      %879 = vmatpush2.bf16.msra.mxu0 0
      %880 = vmatprep.subr.bf16.mxu0 0
      %881 = vmatpush2.bf16.msra.mxu0 0
      %882 = vmatprep.subr.bf16.mxu0 0
      %883 = vmatpush2.bf16.msra.mxu0 0
      %884 = vmatprep.subr.bf16.mxu0 0
      %885 = vmatpush2.bf16.msra.mxu0 0
      %886 = vmatprep.subr.bf16.mxu0 0
      %887 = vmatpush2.bf16.msra.mxu0 0
      %888 = vmatprep.mubr.bf16.mxu0 0
      %889 = vmatmul.mubr.bf16.gmra.mxu0 %v845
      %v890 = vpop.f32.mrf.mxu0
      %v891 = vadd.f32 0.0, %v890
      %v892 = vpop.f32.mrf.mxu0
      %v893 = vpop.f32.mrf.mxu0
      %v894 = vadd.f32 0.0, %v893
      %v895 = vpop.f32.mrf.mxu0
      %896 = vmatprep.mubr.bf16.mxu0 0
      %897 = vmatmul.mubr.bf16.gmra.mxu0 %v848
      %v898 = vpop.f32.mrf.mxu0
      %v899 = vadd.f32 0.0, %v898
      %v900 = vpop.f32.mrf.mxu0
      %v901 = vpop.f32.mrf.mxu0
      %v902 = vadd.f32 0.0, %v901
      %v903 = vpop.f32.mrf.mxu0
      %904 = vmatprep.mubr.bf16.mxu0 0
      %905 = vmatmul.mubr.bf16.gmra.mxu0 %v851
      %v906 = vpop.f32.mrf.mxu0
      %v907 = vadd.f32 0.0, %v906
      %v908 = vpop.f32.mrf.mxu0
      %v909 = vpop.f32.mrf.mxu0
      %v910 = vadd.f32 0.0, %v909
      %v911 = vpop.f32.mrf.mxu0
      %912 = vmatprep.mubr.bf16.mxu0 0
      %913 = vmatmul.mubr.bf16.gmra.mxu0 %v854
      %v914 = vpop.f32.mrf.mxu0
      %v915 = vadd.f32 0.0, %v914
      %v916 = vpop.f32.mrf.mxu0
      %v917 = vpop.f32.mrf.mxu0
      %v918 = vadd.f32 0.0, %v917
      %v919 = vpop.f32.mrf.mxu0
      %920 = vdwg.mxu0
      %v921 = vadd.f32 %v816, %v891
      %v922 = vadd.f32 %v817, %v894
      %v923 = vadd.f32 %v818, %v899
      %v924 = vadd.f32 %v819, %v902
      %v925 = vadd.f32 %v820, %v907
      %v926 = vadd.f32 %v821, %v910
      %v927 = vadd.f32 %v822, %v915
      %v928 = vadd.f32 %v823, %v918
      %v929 = vadd.f32 %v921, %v922
      %v930 = vadd.f32 %v929, %v923
      %v931 = vadd.f32 %v930, %v924
      %v932 = vadd.f32 %v931, %v925
      %v933 = vadd.f32 %v932, %v926
      %v934 = vadd.f32 %v933, %v927
      %v935 = vadd.f32 %v934, %v928
      %v936 = vrot.slane %v935, 4
      %v937 = vadd.f32 %v935, %v936
      %v938 = vrot.slane %v937, 2
      %v939 = vadd.f32 %v937, %v938
      %v940 = vrot.slane %v939, 1
      %v941 = vadd.f32 %v939, %v940
      %v942 = vmul.f32 %v921, %v921
      %v943 = vmul.f32 %v922, %v922
      %v944 = vmul.f32 %v923, %v923
      %v945 = vmul.f32 %v924, %v924
      %v946 = vmul.f32 %v925, %v925
      %v947 = vmul.f32 %v926, %v926
      %v948 = vmul.f32 %v927, %v927
      %v949 = vmul.f32 %v928, %v928
      %v950 = vadd.f32 %v942, %v943
      %v951 = vadd.f32 %v950, %v944
      %v952 = vadd.f32 %v951, %v945
      %v953 = vadd.f32 %v952, %v946
      %v954 = vadd.f32 %v953, %v947
      %v955 = vadd.f32 %v954, %v948
      %v956 = vadd.f32 %v955, %v949
      %v957 = vrot.slane %v956, 4
      %v958 = vadd.f32 %v956, %v957
      %v959 = vrot.slane %v958, 2
      %v960 = vadd.f32 %v958, %v959
      %v961 = vrot.slane %v960, 1
      %v962 = vadd.f32 %v960, %v961
      %v963 = vmul.f32 %v941, 0.015625
      %v964 = vmul.f32 %v962, 0.015625
      %v965 = vmul.f32 %v963, %v963
      %v966 = vsub.f32 %v964, %v965
      %v967 = vsub.f32 %v921, %v963
      %v968 = vsub.f32 %v922, %v963
      %v969 = vsub.f32 %v923, %v963
      %v970 = vsub.f32 %v924, %v963
      %v971 = vsub.f32 %v925, %v963
      %v972 = vsub.f32 %v926, %v963
      %v973 = vsub.f32 %v927, %v963
      %v974 = vsub.f32 %v928, %v963
      %v975 = vadd.f32 %v966, 1e-05
      %v976 = vrsqrt.pop %v975
      %v977 = vmul.f32 %v967, %v976
      %v978 = vmul.f32 %v968, %v976
      %v979 = vmul.f32 %v969, %v976
      %v980 = vmul.f32 %v970, %v976
      %v981 = vmul.f32 %v971, %v976
      %v982 = vmul.f32 %v972, %v976
      %v983 = vmul.f32 %v973, %v976
      %v984 = vmul.f32 %v974, %v976
      %vm985 = vcmp.ge.f32.partialorder %v977, 0.0
      %vm986 = vcmp.ge.f32.partialorder %v978, 0.0
      %vm987 = vcmp.ge.f32.partialorder %v979, 0.0
      %vm988 = vcmp.ge.f32.partialorder %v980, 0.0
      %vm989 = vcmp.ge.f32.partialorder %v981, 0.0
      %vm990 = vcmp.ge.f32.partialorder %v982, 0.0
      %vm991 = vcmp.ge.f32.partialorder %v983, 0.0
      %vm992 = vcmp.ge.f32.partialorder %v984, 0.0
      %v993 = vmul.f32 %v977, 0.2
      %v994 = vmul.f32 %v978, 0.2
      %v995 = vmul.f32 %v979, 0.2
      %v996 = vmul.f32 %v980, 0.2
      %v997 = vmul.f32 %v981, 0.2
      %v998 = vmul.f32 %v982, 0.2
      %v999 = vmul.f32 %v983, 0.2
      %v1000 = vmul.f32 %v984, 0.2
      %v1001 = vsel %vm985, %v977, %v993
      %v1002 = vsel %vm986, %v978, %v994
      %v1003 = vsel %vm987, %v979, %v995
      %v1004 = vsel %vm988, %v980, %v996
      %v1005 = vsel %vm989, %v981, %v997
      %v1006 = vsel %vm990, %v982, %v998
      %v1007 = vsel %vm991, %v983, %v999
      %v1008 = vsel %vm992, %v984, %v1000
      %v1009 = vpack.c.bf16 %v1002, %v1001
      %v1010 = vpack.c.bf16 %v1004, %v1003
      %v1011 = vpack.c.bf16 %v1006, %v1005
      %v1012 = vpack.c.bf16 %v1008, %v1007
      %v1017 = vunpack.c.l.b16 %v1009
      %v1018 = vunpack.c.h.b16 %v1009
      %v1019 = vunpack.c.l.b16 %v1010
      %v1020 = vunpack.c.h.b16 %v1010
      %v1021 = vunpack.c.l.b16 %v1011
      %v1022 = vunpack.c.h.b16 %v1011
      %v1023 = vunpack.c.l.b16 %v1012
      %v1024 = vunpack.c.h.b16 %v1012
      %v1025 = vpack.c.b16 %v1017, %v1017
      %v1026 = vpack.c.b16 %v1018, %v1018
      %v1027 = vpack.c.b16 %v1019, %v1019
      %v1028 = vpack.c.b16 %v1020, %v1020
      %v1029 = vpack.c.b16 %v1021, %v1021
      %v1030 = vpack.c.b16 %v1022, %v1022
      %v1031 = vpack.c.b16 %v1023, %v1023
      %v1032 = vpack.c.b16 %v1024, %v1024
      %1041 = vst [vmem:[%s238] sm:$0xf] %v1025
      %1042 = vst [vmem:[%s238 + $0x4] sm:$0xf] %v1026
      %1043 = vst [vmem:[%s238 + $0x8] sm:$0xf] %v1027
      %1044 = vst [vmem:[%s238 + $0xc] sm:$0xf] %v1028
      %1045 = vst [vmem:[%s238 + $0x10] sm:$0xf] %v1029
      %1046 = vst [vmem:[%s238 + $0x14] sm:$0xf] %v1030
      %1047 = vst [vmem:[%s238 + $0x18] sm:$0xf] %v1031
      %1048 = vst [vmem:[%s238 + $0x1c] sm:$0xf] %v1032
      %s1049 = smul.u32 8, %s21
      %p1050 = scmp.lt.s32.totalorder %s19, 1
      %s1051 = scalar_select %p1050, %s19, 1
      %p1052 = scmp.lt.s32.totalorder %s1049, 7
      %s1053 = scalar_select %p1052, %s1049, 7
      %p1054 = scmp.lt.s32.totalorder %s20, 0
      %s1055 = scalar_select %p1054, %s20, 0
      %s1056 = sadd.s32 %s1055, %s1053
      %s1057 = smul.addr %s1051, 8
      %s1058 = sadd.s32 %s1056, %s1057
      %s1059 = smul.addr %s1058, 4
      %s1060 = scalar_lea.vmem %s3, %s1059
      // Predicated region
      $region33: #{downsample.1} parent=31 // pred_check
        %p1061 = pneg %p133
      $region34: #{downsample.1} parent=31 // pred_check_branch
        %1063 = sbr.rel (%p1061) target = $region36
      $region35: #{downsample.1} parent=31 // pred_region
        %s1064 = smul.u32 8, %s21
      $region36: #{downsample.1} parent=31 // pred_fallthru
        _
    $region32: #{downsample.1} parent=5 // pred_fallthru
      _
    %p1065 = scmp.le.s32.totalorder 2, %s9
    // Predicated region
    $region37: #{downsample.1} parent=5 // pred_check
      %p1066 = pneg %p1065
    $region38: #{downsample.1} parent=5 // pred_check_branch
      %1068 = sbr.rel (%p1066) target = $region40
    $region39: #{downsample.1} parent=5 // pred_region
      %s1069 = ssub.s32 %s9, 2
      // Predicated region
      $region41: #{downsample.1} parent=39 // pred_check
        %p1070 = pneg %p139
      $region42: #{downsample.1} parent=39 // pred_check_branch
        %1072 = sbr.rel (%p1070) target = $region44
      $region43: #{downsample.1} parent=39 // pred_region
        %s1073 = smul.u32 8, %s24
        %p1074 = scmp.lt.s32.totalorder %s22, 1
        %s1075 = scalar_select %p1074, %s22, 1
        %p1076 = scmp.lt.s32.totalorder %s1073, 7
        %s1077 = scalar_select %p1076, %s1073, 7
        %p1078 = scmp.lt.s32.totalorder %s23, 0
        %s1079 = scalar_select %p1078, %s23, 0
        %s1080 = sadd.s32 %s1079, %s1077
        %s1081 = smul.addr %s1075, 8
        %s1082 = sadd.s32 %s1080, %s1081
        %s1083 = smul.addr %s1082, 4
        %s1084 = scalar_lea.vmem %s3, %s1083
      $region44: #{downsample.1} parent=39 // pred_fallthru
        _
    $region40: #{downsample.1} parent=5 // pred_fallthru
      _
  $region6: #{downsample.1} parent=0 // loop_footer
    %s13 = sadd.s32 1, %s9
  $region7: #{downsample.1} parent=0 // loop_footer_branch
    %8 = sbr.rel target = $region3
  $region8: #{downsample.1} parent=0 // loop_exit
    _

</llo_original>
